<compile_context>
chip_gen: v7x
topology: tpu7x:2x2x1
jax: 0.10.0
libtpu: 0.0.40
codegen_flags: <defaults>
</compile_context>

<pallas_src>
import functools
import numpy as np
import jax
import jax.numpy as jnp
from jax import lax
from jax.experimental import pallas as pl
from jax.experimental.pallas import tpu as pltpu

# ----------------------------------------------------------------------------
# Module configuration (small synthetic sizes consistent with the forward pass)
# ----------------------------------------------------------------------------
DICTIONARY = [{"person": 1.0}, {"car": 1.0}, {"bicycle": 1.0}]
NUM_CLASSES = len(DICTIONARY)          # self._num_classes
IN_FEATURES = 32                       # box head representation size (real: 1024)
IN_FEATURES_MASK = 32                  # mask head channels           (real: 256)
HIDDEN_LAYER = 32                      # MaskRCNNPredictor hidden     (real: 256)
NUM_ROIS = 8
MASK_HW = 8                            # mask feature spatial size    (real: 14)

HEAD_LANES = 128                       # lane-dense padded output width
MASK_ROW_TILE = 1024                   # amortize ~0.35us/step; live intermediate is (tile, Chid)
BOX_ROW_TILE = 1024                    # typical post-NMS R (~1000) -> one grid step
NORM_LANE_TILE = 32768                 # normalize is HBM-bound; big lane-dense blocks
NORM_BLOCK_BYTES = 4 << 20             # target f32 block size for the normalize pass


# ----------------------------------------------------------------------------
# Tiling / VMEM helpers
# ----------------------------------------------------------------------------
@functools.lru_cache(maxsize=None)
def _vmem_limit_bytes():
    """Per-generation scoped-VMEM limit (~3/4 of physical capacity):
    v5e/v6e 128 MiB -> 96 MiB, v7x 64 MiB -> 48 MiB."""
    try:
        cap = int(pltpu.get_tpu_info().vmem_capacity_bytes)
    except Exception:
        cap = 64 * 1024 * 1024         # conservative fallback, valid on every gen
    return (cap * 3) // 4


def _round_up(x, m):
    return ((x + m - 1) // m) * m


def _row_tiling(rows, preferred, min_steps=1):
    """Return (row_tile, padded_rows): tile is a multiple of 8, <= preferred;
    rows are padded up to a multiple of the tile (pad-to-tile instead of a
    divisor search, so blocks stay (8,128)-aligned, bounded and pipelined).
    min_steps>1 keeps the grid long enough to shard across 2-TC chips."""
    rows8 = _round_up(rows, 8)
    tile = min(preferred, rows8)
    if min_steps > 1 and rows8 > 8:
        tile = min(tile, max(8, _round_up((rows8 + min_steps - 1) // min_steps, 8)))
    return tile, _round_up(rows8, tile)


def _pad_rows(x, padded_rows):
    if x.shape[0] == padded_rows:
        return x
    return jnp.pad(x, ((0, padded_rows - x.shape[0]),) + ((0, 0),) * (x.ndim - 1))


def _choose_image_fold(N, C, H, W):
    """Pick h_fold | H so NCHW flattens (zero-copy reshape) to
    (N*C*h_fold, (H//h_fold)*W) with maximum vreg occupancy (sublane=8 and
    lane=128 fill); prefer wider lane dims on ties.  At real 800x800 sizes
    this hits 100% occupancy (e.g. N=1: 24 rows x 80000 lanes)."""
    best_key, best_fold = None, 1
    for h_fold in range(1, H + 1):
        if H % h_fold:
            continue
        rows = N * C * h_fold
        lanes = (H // h_fold) * W
        occ = (rows * lanes) / float(_round_up(rows, 8) * _round_up(lanes, 128))
        key = (occ, lanes)
        if best_key is None or key > best_key:
            best_key, best_fold = key, h_fold
    return best_fold


def _lane_tiling(lanes, rows):
    """Lane tile for the normalize kernel: multiple of 128, bounded so one
    block stays around NORM_BLOCK_BYTES; prefer a divisor of `lanes` (no pad
    copy), otherwise pad lanes up to a multiple of the tile."""
    preferred = min(NORM_LANE_TILE,
                    max(128, (NORM_BLOCK_BYTES // (4 * max(rows, 1))) // 128 * 128))
    if lanes <= preferred:
        return lanes, lanes
    for t in range(preferred, 127, -128):
        if lanes % t == 0:
            return t, lanes
    return preferred, _round_up(lanes, preferred)


# ----------------------------------------------------------------------------
# Pallas kernels
# ----------------------------------------------------------------------------
def _normalize_kernel(x_ref, mean_ref, inv_std_ref, o_ref):
    # (x - mean) * inv_std ; mean/inv_std are per-row (per image-row-band) columns.
    o_ref[...] = (x_ref[...] - mean_ref[...]) * inv_std_ref[...]


def _box_head_kernel(x_ref, w_ref, b_ref, o_ref, *, num_classes):
    # Fused FastRCNNPredictor head.  w_ref is (F, 128) bf16 with columns:
    #   [0:K]    cls logits
    #   [K:2K]   cls logits again (inference softmax applied to this range)
    #   [2K:6K]  bbox deltas
    #   rest     zero padding (lane-dense output)
    x = x_ref[...]                                              # bf16 activations
    slab = jnp.dot(x, w_ref[...], preferred_element_type=jnp.float32) + b_ref[...]

    col = lax.broadcasted_iota(jnp.int32, slab.shape, 1)
    pmask = (col >= num_classes) & (col < 2 * num_classes)
    neg = jnp.where(pmask, slab, -jnp.inf)
    m = jnp.max(neg, axis=-1, keepdims=True)
    e = jnp.exp(neg - m)                                        # 0 outside prob columns
    denom = jnp.sum(e, axis=-1, keepdims=True)
    probs = e * pl.reciprocal(denom, approx=True)               # EUP slot, free under MXU
    o_ref[...] = jnp.where(pmask, probs, slab)


def _mask_head_kernel(x_ref, wde_ref, bde_ref, wfcn_ref, bfcn_ref, o_ref):
    # Fused MaskRCNNPredictor.  The k=2,s=2 transposed conv is 4 independent
    # (Cin -> Chid) matmuls, one per output sub-position p = a*2 + b.  Each is
    # followed by ReLU and its own (Chid -> lane-padded K block) 1x1-conv
    # matmul, accumulated into a single 128-lane logits slab.  This keeps the
    # live intermediate at (row_tile, Chid) instead of (row_tile, 4*Chid) while
    # doing the exact same total MXU work.
    x = x_ref[...]                                              # (rows_t, Cin) bf16
    acc = None
    for p in range(4):                                          # static unroll
        h = jnp.dot(x, wde_ref[p], preferred_element_type=jnp.float32) + bde_ref[p]
        h = jnp.maximum(h, 0.0)                                 # ReLU (f32)
        t = jnp.dot(h.astype(jnp.bfloat16), wfcn_ref[p],
                    preferred_element_type=jnp.float32)
        acc = t if acc is None else acc + t
    logits = acc + bfcn_ref[...]
    o_ref[...] = jax.nn.sigmoid(logits).astype(o_ref.dtype)     # bf16 lane-dense slab


# ----------------------------------------------------------------------------
# Wrappers (pallas_call plumbing)
# ----------------------------------------------------------------------------
def image_normalize(imgs, mean_c, inv_std_c):
    """GeneralizedRCNNTransform normalize: (x - mean[c]) * inv_std[c], NCHW f32."""
    N, C, H, W = imgs.shape
    h_fold = _choose_image_fold(N, C, H, W)
    rows = N * C * h_fold
    lanes = (H // h_fold) * W
    x2 = imgs.reshape(rows, lanes)                              # zero-copy reshape

    mean_rows = jnp.tile(jnp.repeat(mean_c, h_fold), N).reshape(rows, 1)
    inv_rows = jnp.tile(jnp.repeat(inv_std_c, h_fold), N).reshape(rows, 1)

    lane_tile, lanes_p = _lane_tiling(lanes, rows)
    if lanes_p != lanes:
        x2 = jnp.pad(x2, ((0, 0), (0, lanes_p - lanes)))
    grid = (lanes_p // lane_tile,)

    out = pl.pallas_call(
        _normalize_kernel,
        out_shape=jax.ShapeDtypeStruct((rows, lanes_p), jnp.float32),
        grid=grid,
        in_specs=[
            pl.BlockSpec((rows, lane_tile), lambda i: (0, i)),
            pl.BlockSpec((rows, 1), lambda i: (0, 0)),
            pl.BlockSpec((rows, 1), lambda i: (0, 0)),
        ],
        out_specs=pl.BlockSpec((rows, lane_tile), lambda i: (0, i)),
        compiler_params=pltpu.CompilerParams(
            dimension_semantics=("parallel",),
            vmem_limit_bytes=_vmem_limit_bytes()),
    )(x2, mean_rows, inv_rows)
    if lanes_p != lanes:
        out = out[:, :lanes]
    return out.reshape(N, C, H, W)


def box_predictor(box_feats, w_head_bf16, b_head, num_classes):
    """Returns (scores, probs, deltas) sliced from one lane-dense (R, 128) slab."""
    R, F = box_feats.shape
    L = w_head_bf16.shape[1]
    x = box_feats.astype(jnp.bfloat16)                          # halve activation DMA bytes
    row_tile, rows_p = _row_tiling(R, BOX_ROW_TILE)             # typical R -> one step
    x = _pad_rows(x, rows_p)
    grid = (rows_p // row_tile,)

    slab = pl.pallas_call(
        functools.partial(_box_head_kernel, num_classes=num_classes),
        out_shape=jax.ShapeDtypeStruct((rows_p, L), jnp.float32),
        grid=grid,
        in_specs=[
            pl.BlockSpec((row_tile, F), lambda i: (i, 0)),
            pl.BlockSpec((F, L), lambda i: (0, 0)),
            pl.BlockSpec((1, L), lambda i: (0, 0)),
        ],
        out_specs=pl.BlockSpec((row_tile, L), lambda i: (i, 0)),
        compiler_params=pltpu.CompilerParams(
            dimension_semantics=("parallel",),
            vmem_limit_bytes=_vmem_limit_bytes()),
    )(x, w_head_bf16, b_head)

    K = num_classes
    scores = slab[:R, :K]
    probs = slab[:R, K:2 * K]
    deltas = slab[:R, 2 * K:2 * K + 4 * K]
    return scores, probs, deltas


def mask_predictor(mask_feats_rhwc, w_de3, b_de3, w_fcn3, b_fcn, num_classes):
    """mask_feats_rhwc: channels-last ROI features (R, H, W, Cin).
    Returns masks (R, K, 2H, 2W) (torchvision layout)."""
    R, H, W, Cin = mask_feats_rhwc.shape
    rows = R * H * W
    Chid = w_de3.shape[2]
    L = w_fcn3.shape[2]
    x = mask_feats_rhwc.reshape(rows, Cin).astype(jnp.bfloat16)  # halve activation DMA bytes

    # Big row tile (>=1024 at realistic sizes) amortizes per-step overhead; keep
    # >=2 grid steps when possible so 2-TC chips shard the "parallel" axis.
    row_tile, rows_p = _row_tiling(rows, MASK_ROW_TILE, min_steps=2)
    x = _pad_rows(x, rows_p)
    grid = (rows_p // row_tile,)

    out = pl.pallas_call(
        _mask_head_kernel,
        out_shape=jax.ShapeDtypeStruct((rows_p, L), jnp.bfloat16),
        grid=grid,
        in_specs=[
            pl.BlockSpec((row_tile, Cin), lambda i: (i, 0)),
            pl.BlockSpec((4, Cin, Chid), lambda i: (0, 0, 0)),
            pl.BlockSpec((4, 1, Chid), lambda i: (0, 0, 0)),
            pl.BlockSpec((4, Chid, L), lambda i: (0, 0, 0)),
            pl.BlockSpec((1, L), lambda i: (0, 0)),
        ],
        out_specs=pl.BlockSpec((row_tile, L), lambda i: (i, 0)),
        compiler_params=pltpu.CompilerParams(
            dimension_semantics=("parallel",),
            vmem_limit_bytes=_vmem_limit_bytes()),
    )(x, w_de3, b_de3, w_fcn3, b_fcn)

    # Columns are ordered c = (a*2+b)*K + k.  Small post-kernel interleave to the
    # torchvision (R, K, 2H, 2W) layout.  TODO(synk): if downstream consumers can
    # take channels-last masks, drop this relayout pass entirely.
    K = num_classes
    y = out[:rows, :4 * K].astype(jnp.float32).reshape(R, H, W, 2, 2, K)  # (r,i,j,a,b,k)
    y = jnp.transpose(y, (0, 5, 1, 3, 2, 4))                              # (r,k,i,a,j,b)
    return y.reshape(R, K, 2 * H, 2 * W)


# ----------------------------------------------------------------------------
# Deterministic parameter initialization (synthetic; no checkpoint loading)
# ----------------------------------------------------------------------------
def make_params():
    keys = jax.random.split(jax.random.PRNGKey(42), 8)
    F, Cin, Chid, K = IN_FEATURES, IN_FEATURES_MASK, HIDDEN_LAYER, NUM_CLASSES
    assert 2 * K + 4 * K <= HEAD_LANES and 4 * K <= HEAD_LANES

    def uniform(key, shape, fan_in):
        bound = float(np.sqrt(6.0 / fan_in))
        return jax.random.uniform(key, shape, jnp.float32, -bound, bound)

    params = {
        # FastRCNNPredictor: Linear(F, K) and Linear(F, 4K), stored (in, out)
        "w_cls": uniform(keys[0], (F, K), F),
        "b_cls": uniform(keys[4], (K,), F) * 0.1,
        "w_bbox": uniform(keys[1], (F, 4 * K), F),
        "b_bbox": uniform(keys[5], (4 * K,), F) * 0.1,
        # MaskRCNNPredictor conv5_mask: ConvTranspose2d(Cin, Chid, 2, 2),
        # PyTorch weight layout (Cin, Chid, 2, 2)
        "w_de_pt": uniform(keys[2], (Cin, Chid, 2, 2), Cin * 4),
        "b_de": uniform(keys[6], (Chid,), Cin) * 0.1,
        # mask_fcn_logits: Conv2d(Chid, K, 1) stored as (Chid, K)
        "w_fcn": uniform(keys[3], (Chid, K), Chid),
        "b_fcn": uniform(keys[7], (K,), Chid) * 0.1,
        # GeneralizedRCNNTransform ImageNet normalization constants
        "img_mean": jnp.asarray([0.485, 0.456, 0.406], jnp.float32),
        "img_inv_std": 1.0 / jnp.asarray([0.229, 0.224, 0.225], jnp.float32),
    }

    # ---- fused / lane-padded kernel weights ---------------------------------
    # Box head: one (F, 128) bf16 weight; cols [0:K]=cls, [K:2K]=cls (softmax
    # target), [2K:6K]=bbox, rest zero.
    w_head = jnp.zeros((F, HEAD_LANES), jnp.float32)
    w_head = w_head.at[:, 0:K].set(params["w_cls"])
    w_head = w_head.at[:, K:2 * K].set(params["w_cls"])
    w_head = w_head.at[:, 2 * K:6 * K].set(params["w_bbox"])
    b_head = jnp.zeros((1, HEAD_LANES), jnp.float32)
    b_head = b_head.at[0, 0:K].set(params["b_cls"])
    b_head = b_head.at[0, K:2 * K].set(params["b_cls"])
    b_head = b_head.at[0, 2 * K:6 * K].set(params["b_bbox"])
    params["w_head_bf16"] = w_head.astype(jnp.bfloat16)
    params["b_head"] = b_head

    # Mask head, chunked per deconv position p = a*2+b:
    #   w_de3[p]  : (Cin, Chid)   deconv weight for position (a, b)
    #   b_de3[p]  : (1, Chid)     deconv bias (same for every position)
    #   w_fcn3[p] : (Chid, 128)   1x1-conv weight placed at columns [p*K:(p+1)*K]
    w_de3 = jnp.transpose(params["w_de_pt"], (2, 3, 0, 1)).reshape(4, Cin, Chid)
    params["w_de3"] = w_de3.astype(jnp.bfloat16)
    params["b_de3"] = jnp.tile(params["b_de"].reshape(1, 1, Chid), (4, 1, 1))

    w_fcn3 = jnp.zeros((4, Chid, HEAD_LANES), jnp.float32)
    for p in range(4):
        w_fcn3 = w_fcn3.at[p, :, p * K:(p + 1) * K].set(params["w_fcn"])
    params["w_fcn3"] = w_fcn3.astype(jnp.bfloat16)
    b_fcn_pad = jnp.zeros((1, HEAD_LANES), jnp.float32)
    b_fcn_pad = b_fcn_pad.at[0, :4 * K].set(jnp.tile(params["b_fcn"], 4))
    params["b_fcn_pad"] = b_fcn_pad
    return params


# ----------------------------------------------------------------------------
# Forward pass (infer mode)
# ----------------------------------------------------------------------------
def maskrcnn_forward(imgs, box_feats, mask_feats_rhwc, params):
    imgs_norm = image_normalize(imgs, params["img_mean"], params["img_inv_std"])
    # TODO(synk): backbone / RPN / RoIAlign would map imgs_norm -> ROI features.
    scores, probs, deltas = box_predictor(
        box_feats, params["w_head_bf16"], params["b_head"], NUM_CLASSES)
    masks = mask_predictor(
        mask_feats_rhwc, params["w_de3"], params["b_de3"],
        params["w_fcn3"], params["b_fcn_pad"], NUM_CLASSES)
    return {"imgs_norm": imgs_norm, "scores": scores, "probs": probs,
            "deltas": deltas, "masks": masks}


def reference_forward(imgs, box_feats, mask_feats_rhwc, params):
    """Independent plain-JAX reference using the same bf16 MXU operand casts."""
    bf = jnp.bfloat16
    mean = params["img_mean"].reshape(1, 3, 1, 1)
    inv = params["img_inv_std"].reshape(1, 3, 1, 1)
    imgs_norm = (imgs - mean) * inv

    xb = box_feats.astype(bf)
    logits = jnp.dot(xb, params["w_cls"].astype(bf),
                     preferred_element_type=jnp.float32) + params["b_cls"]
    probs = jax.nn.softmax(logits, axis=-1)
    deltas = jnp.dot(xb, params["w_bbox"].astype(bf),
                     preferred_element_type=jnp.float32) + params["b_bbox"]

    # ConvTranspose2d k=2 s=2: y[r, d, 2i+a, 2j+b] = sum_c x[r,i,j,c] W[c,d,a,b] + b[d]
    mf = mask_feats_rhwc.astype(bf)                     # (R, H, W, Cin)
    wde = params["w_de_pt"].astype(bf)                  # (Cin, Chid, 2, 2)
    y = jnp.einsum("rijc,cdab->rijabd", mf, wde,
                   preferred_element_type=jnp.float32) + params["b_de"]
    y = jnp.maximum(y, 0.0)
    mlog = jnp.einsum("rijabd,dk->rijabk", y.astype(bf), params["w_fcn"].astype(bf),
                      preferred_element_type=jnp.float32) + params["b_fcn"]
    masks = jax.nn.sigmoid(mlog)                        # (R, i, j, a, b, K)
    R, H, W = mf.shape[0], mf.shape[1], mf.shape[2]
    K = params["w_fcn"].shape[1]
    masks = jnp.transpose(masks, (0, 5, 1, 3, 2, 4)).reshape(R, K, 2 * H, 2 * W)

    return {"imgs_norm": imgs_norm, "scores": logits, "probs": probs,
            "deltas": deltas, "masks": masks}


if __name__ == "__main__":
    key = jax.random.PRNGKey(0)
    k_img, k_box, k_mask = jax.random.split(key, 3)

    imgs = jax.random.uniform(k_img, (2, 3, 16, 16), jnp.float32)               # NCHW
    box_feats = jax.random.normal(k_box, (NUM_ROIS, IN_FEATURES), jnp.float32)  # (R, F)
    # mask ROI features are accepted channels-last: (R, H, W, Cin)
    mask_feats = jax.random.normal(
        k_mask, (NUM_ROIS, MASK_HW, MASK_HW, IN_FEATURES_MASK), jnp.float32)

    params = make_params()

    out = maskrcnn_forward(imgs, box_feats, mask_feats, params)
    out = jax.tree_util.tree_map(jax.block_until_ready, out)

    ref = reference_forward(imgs, box_feats, mask_feats, params)
    for name in ("imgs_norm", "scores", "probs", "deltas", "masks"):
        np.testing.assert_allclose(np.asarray(out[name]), np.asarray(ref[name]),
                                   rtol=1e-2, atol=1e-2)

    print("KERNEL_OK")
</pallas_src>

<mosaic_0001>
module attributes {stable_mosaic.version = 11 : i64} {
  func.func @_normalize_kernel(%arg0: i32, %arg1: memref<6x256xf32, #tpu.memory_space<vmem>>, %arg2: memref<6x1xf32, #tpu.memory_space<vmem>>, %arg3: memref<6x1xf32, #tpu.memory_space<vmem>>, %arg4: memref<6x256xf32, #tpu.memory_space<vmem>>) attributes {dimension_semantics = [#tpu.dimension_semantics<parallel>], iteration_bounds = array<i64: 1>, scalar_prefetch = 0 : i64, scratch_operands = 0 : i64, tpu.core_type = #tpu.core_type<tc>, window_params = [{transform_indices = @transform_0, window_bounds = array<i64: 6, 256>}, {pipeline_mode = #tpu.pipeline_mode<synchronous>, transform_indices = @transform_1, window_bounds = array<i64: 6, 1>}, {pipeline_mode = #tpu.pipeline_mode<synchronous>, transform_indices = @transform_2, window_bounds = array<i64: 6, 1>}, {transform_indices = @transform_3, window_bounds = array<i64: 6, 256>}]} {
    %c0 = arith.constant 0 : index
    %c0_0 = arith.constant 0 : index
    %0 = vector.load %arg1[%c0, %c0_0] : memref<6x256xf32, #tpu.memory_space<vmem>>, vector<6x256xf32>
    %c0_1 = arith.constant 0 : index
    %c0_2 = arith.constant 0 : index
    %1 = vector.load %arg2[%c0_1, %c0_2] : memref<6x1xf32, #tpu.memory_space<vmem>>, vector<6x1xf32>
    %2 = vector.broadcast %1 : vector<6x1xf32> to vector<6x256xf32>
    %3 = arith.subf %0, %2 : vector<6x256xf32>
    %c0_3 = arith.constant 0 : index
    %c0_4 = arith.constant 0 : index
    %4 = vector.load %arg3[%c0_3, %c0_4] : memref<6x1xf32, #tpu.memory_space<vmem>>, vector<6x1xf32>
    %5 = vector.broadcast %4 : vector<6x1xf32> to vector<6x256xf32>
    %6 = arith.mulf %3, %5 : vector<6x256xf32>
    %c0_5 = arith.constant 0 : index
    %c0_6 = arith.constant 0 : index
    %7 = vector.load %arg4[%c0_5, %c0_6] : memref<6x256xf32, #tpu.memory_space<vmem>>, vector<6x256xf32>
    tpu.vector_store %arg4[%c0_5, %c0_6], %6 {strides = array<i32>} : memref<6x256xf32, #tpu.memory_space<vmem>>, vector<6x256xf32>,
    return
  }
  func.func @transform_0(%arg0: i32) -> (i32, i32) {
    %c0_i32 = arith.constant 0 : i32
    %c0_i32_0 = arith.constant 0 : i32
    return %c0_i32, %arg0 : i32, i32
  }
  func.func @transform_1(%arg0: i32) -> (i32, i32) {
    %c0_i32 = arith.constant 0 : i32
    %c0_i32_0 = arith.constant 0 : i32
    %c0_i32_1 = arith.constant 0 : i32
    return %c0_i32, %c0_i32_0 : i32, i32
  }
  func.func @transform_2(%arg0: i32) -> (i32, i32) {
    %c0_i32 = arith.constant 0 : i32
    %c0_i32_0 = arith.constant 0 : i32
    %c0_i32_1 = arith.constant 0 : i32
    return %c0_i32, %c0_i32_0 : i32, i32
  }
  func.func @transform_3(%arg0: i32) -> (i32, i32) {
    %c0_i32 = arith.constant 0 : i32
    %c0_i32_0 = arith.constant 0 : i32
    return %c0_i32, %arg0 : i32, i32
  }
}

</mosaic_0001>

<llo_original>
// kernel: tpu_custom_call.1
$region0: #{tpu_custom_call.1}
  #allocation0 [shape = 'u32[]', space=smem, size = 0x4, offset = 0x4, fixed_abs, tag = 'smem constant byte address 0x4 - core index']
  #allocation1 [shape = 'u32[144,128]{1,0:T(1,128)}', space=vmem, size = 0x12000, scoped, tag = 'internal scratch']
  %s0 = inlined_call_operand.vmem [shape: f32[6,256], index: 0, kind: input, shape index: {}]
  %s1 = inlined_call_operand.vmem [shape: f32[6,1], index: 1, kind: input, shape index: {}]
  %s2 = inlined_call_operand.vmem [shape: f32[6,1], index: 2, kind: input, shape index: {}]
  %s3 = inlined_call_operand.hbm [shape: f32[6,256], index: 3, kind: output, shape index: {}]
  %s4 = sld [smem:[#allocation0]]
  $region22: #{tpu_custom_call.1} parent=0
    _
  %s6 = ssub.s32 1, %s4
  %s7 = scalar_select 0, %s6, %s4
  $region1: #{tpu_custom_call.1} parent=0
    #allocation2 [shape = 'u8[8192]{0}', space=vmem, size = 0x2000, scoped, tag = 'output window, operand 0, single buffered']
    #allocation3 [shape = 's32[1]{0}', space=sflag, size = 0x4, scoped, tag = 'scoped memory for tpu_custom_call.1']
    %8 = vsyncpa [#allocation3], 0
    // Predicated region
    $region2: #{tpu_custom_call.1} parent=1 // pred_check
      _
    $region3: #{tpu_custom_call.1} parent=1 // pred_check_branch
      %10 = sbr.rel (0) target = $region5
    $region4: #{tpu_custom_call.1} parent=1 // pred_region
      _
    $region5: #{tpu_custom_call.1} parent=1 // pred_fallthru
      _
    // Predicated region
    $region6: #{tpu_custom_call.1} parent=1 // pred_check
      _
    $region7: #{tpu_custom_call.1} parent=1 // pred_check_branch
      %12 = sbr.rel (0) target = $region9
    $region8: #{tpu_custom_call.1} parent=1 // pred_region
      _
    $region9: #{tpu_custom_call.1} parent=1 // pred_fallthru
      _
    // Predicated region
    $region10: #{tpu_custom_call.1} parent=1 // pred_check
      _
    $region11: #{tpu_custom_call.1} parent=1 // pred_check_branch
      %14 = sbr.rel (0) target = $region13
    $region12: #{tpu_custom_call.1} parent=1 // pred_region
      _
    $region13: #{tpu_custom_call.1} parent=1 // pred_fallthru
      _
    %v15 = vld [vmem:[%s0] sm:$0x3f]
    %v16 = vld [vmem:[%s0 + $0x8] sm:$0x3f]
    %v17 = vld [vmem:[%s1] sm:$0x3f]
    %19 = vset.pattern.permute.xlu0 0
    %20 = vperm.xlu0 %19, %v17
    %v21 = vpop.permute.xlu0 %20
    %v23 = vsub.f32 %v15, %v21
    %v24 = vsub.f32 %v16, %v21
    %v25 = vld [vmem:[%s2] sm:$0x3f]
    %27 = vset.pattern.permute.xlu0 0
    %28 = vperm.xlu0 %27, %v25
    %v29 = vpop.permute.xlu0 %28
    %v31 = vmul.f32 %v23, %v29
    %v32 = vmul.f32 %v24, %v29
    %33 = vst [vmem:[#allocation2] sm:$0x3f] %v31
    %34 = vst [vmem:[#allocation2 + $0x8] sm:$0x3f] %v32
    // Predicated region
    $region14: #{tpu_custom_call.1} parent=1 // pred_check
      _
    $region15: #{tpu_custom_call.1} parent=1 // pred_check_branch
      %36 = sbr.rel (0) target = $region17
    $region16: #{tpu_custom_call.1} parent=1 // pred_region
      %s38 = ssub.s32 256, 256
      %39 = vsyncadd [#allocation3], %s38
      %s41 = sshll.u32 [#allocation2], 4
      %s42 = int_to_ptr.vmem [resolvable:$true] %s41
      %44 = dma.vmem_to_hbm [thread:$0]  %s42, 256, %s3, [#allocation3]
    $region17: #{tpu_custom_call.1} parent=1 // pred_fallthru
      _
    // Predicated region
    $region18: #{tpu_custom_call.1} parent=1 // pred_check
      _
    $region19: #{tpu_custom_call.1} parent=1 // pred_check_branch
      %46 = sbr.rel (0) target = $region21
    $region20: #{tpu_custom_call.1} parent=1 // pred_region
      %47 = dma.done [#allocation3], 256
    $region21: #{tpu_custom_call.1} parent=1 // pred_fallthru
      _
    %48 = vsyncpa [#allocation3], 1

</llo_original>
